<compile_context>
chip_gen: v7x
topology: tpu7x:2x2x1
jax: 0.10.0
libtpu: 0.0.40
codegen_flags: <defaults>
</compile_context>

<pallas_src>
import jax
import jax.numpy as jnp
from jax.experimental import pallas as pl
from jax.experimental.pallas import tpu as pltpu

_EPS = 1e-6
_LANE_WIDTHS = (1024, 512, 256, 128)      # candidate lane-dense last dims
_TINY_BYTES = 256 * 1024                  # <= 256 KiB -> single block, no grid
_TARGET_BLOCK_BYTES = 4 * 1024 * 1024     # ~4 MiB per pipelined block
_MIN_GRID_BLOCKS = 4                      # keep pipeline + 2-TC split engaged
_VMEM_LIMIT_BYTES = 32 << 20              # safe on v5e/v6e/v7x


def _expression_kernel(x_ref, o_ref):
    # func(x) = safe_log(square(x)) = log(max(x*x, eps)), elementwise.
    # Note: x*x -> inf for |x| > ~1.8e19 matches PyTorch safe_log(square(x)).
    x = x_ref[...]
    o_ref[...] = jnp.log(jnp.maximum(x * x, _EPS))


def _round_up(v, m):
    return ((v + m - 1) // m) * m


def _pick_cols(n):
    """Largest lane-dense width that divides n exactly (None if n % 128 != 0)."""
    for g in _LANE_WIDTHS:
        if n % g == 0:
            return g
    return None


def _expression_2d(x2d):
    rows, cols = x2d.shape
    itemsize = x2d.dtype.itemsize
    total_bytes = rows * cols * itemsize

    if total_bytes <= _TINY_BYTES:
        # Truly tiny: whole slab in VMEM, no grid, zero per-step overhead.
        # (The (2, 4, 16, 16) example takes this path as a (2, 1024) block.)
        return pl.pallas_call(
            _expression_kernel,
            out_shape=jax.ShapeDtypeStruct(x2d.shape, x2d.dtype),
        )(x2d)

    # Gridded, double-buffered, "parallel" path.
    # Block rows: at most ~4 MiB per block, at least _MIN_GRID_BLOCKS blocks,
    # always a multiple of 8 (second-to-last dim of the (8, 128) vreg tile).
    cap_rows = max(8, (_TARGET_BLOCK_BYTES // (cols * itemsize)) // 8 * 8)
    want_rows = max(8, _round_up(pl.cdiv(rows, _MIN_GRID_BLOCKS), 8))
    block_rows = min(cap_rows, want_rows)

    n_elem = rows * cols
    grid = (pl.cdiv(rows, block_rows),)
    return pl.pallas_call(
        _expression_kernel,
        out_shape=jax.ShapeDtypeStruct(x2d.shape, x2d.dtype),
        grid=grid,
        in_specs=[pl.BlockSpec((block_rows, cols), lambda i: (i, 0))],
        out_specs=pl.BlockSpec((block_rows, cols), lambda i: (i, 0)),
        compiler_params=pltpu.CompilerParams(
            dimension_semantics=("parallel",),
            vmem_limit_bytes=_VMEM_LIMIT_BYTES,
        ),
        cost_estimate=pl.CostEstimate(
            flops=2 * n_elem,
            transcendentals=n_elem,
            bytes_accessed=2 * n_elem * itemsize,
        ),
    )(x2d)


def expression_forward(x):
    """Expression(func) with func = safe_log(square(x)), any shape, f32."""
    orig_shape = x.shape
    n = x.size
    if n == 0:
        return x
    x_flat = x.reshape(-1)

    cols = _pick_cols(n)
    if cols is not None:
        # Exact lane-dense reshape: no pad, no trailing slice, no extra HBM.
        out2d = _expression_2d(x_flat.reshape(n // cols, cols))
        return out2d.reshape(orig_shape)

    # Ragged size (n % 128 != 0): kernel on the 128-aligned prefix, trivial
    # jnp expression on the < 128-element tail.  Avoids padding / slicing the
    # whole tensor (which would triple HBM traffic for large ragged inputs).
    n_main = (n // 128) * 128
    tail = x_flat[n_main:]
    tail_out = jnp.log(jnp.maximum(tail * tail, _EPS))
    if n_main == 0:
        return tail_out.reshape(orig_shape)
    cols_m = _pick_cols(n_main)
    main_out = _expression_2d(
        x_flat[:n_main].reshape(n_main // cols_m, cols_m)
    ).reshape(-1)
    return jnp.concatenate([main_out, tail_out]).reshape(orig_shape)


def expression_reference(x):
    return jnp.log(jnp.maximum(x * x, _EPS))


if __name__ == "__main__":
    key = jax.random.PRNGKey(0)
    fwd = jax.jit(expression_forward)

    # Primary small NCHW input consistent with the module's conv-net context.
    x = jax.random.normal(key, (2, 4, 16, 16), dtype=jnp.float32)
    out = jax.block_until_ready(fwd(x))
    ref = expression_reference(x)
    assert out.shape == x.shape and out.dtype == x.dtype
    assert jnp.allclose(out, ref, atol=1e-5, rtol=1e-5)

    # Sanity check: ragged size (exercises the aligned-prefix + jnp-tail path).
    k1, k2 = jax.random.split(key)
    x_odd = jax.random.normal(k1, (3, 5, 7, 11), dtype=jnp.float32)
    out_odd = jax.block_until_ready(fwd(x_odd))
    assert jnp.allclose(out_odd, expression_reference(x_odd), atol=1e-5, rtol=1e-5)

    # Sanity check: larger input (exercises the gridded, parallel-tiled path).
    x_big = jax.random.normal(k2, (8, 8, 128, 128), dtype=jnp.float32)
    out_big = jax.block_until_ready(fwd(x_big))
    assert jnp.allclose(out_big, expression_reference(x_big), atol=1e-5, rtol=1e-5)

    print("KERNEL_OK")
</pallas_src>

<mosaic_0001>
module attributes {stable_mosaic.version = 11 : i64} {
  func.func @_expression_kernel(%arg0: memref<2x1024xf32, #tpu.memory_space<vmem>>, %arg1: memref<2x1024xf32, #tpu.memory_space<vmem>>) attributes {dimension_semantics = [], scalar_prefetch = 0 : i64, scratch_operands = 0 : i64, tpu.core_type = #tpu.core_type<tc>} {
    %c0 = arith.constant 0 : index
    %c0_0 = arith.constant 0 : index
    %0 = vector.load %arg0[%c0, %c0_0] : memref<2x1024xf32, #tpu.memory_space<vmem>>, vector<2x1024xf32>
    %1 = arith.mulf %0, %0 : vector<2x1024xf32>
    %cst = arith.constant 9.99999997E-7 : f32
    %2 = vector.broadcast %cst : f32 to vector<2x1024xf32>
    %3 = arith.maximumf %1, %2 : vector<2x1024xf32>
    %4 = math.log %3 : vector<2x1024xf32>
    %c0_1 = arith.constant 0 : index
    %c0_2 = arith.constant 0 : index
    %5 = vector.load %arg1[%c0_1, %c0_2] : memref<2x1024xf32, #tpu.memory_space<vmem>>, vector<2x1024xf32>
    tpu.vector_store %arg1[%c0_1, %c0_2], %4 {strides = array<i32>} : memref<2x1024xf32, #tpu.memory_space<vmem>>, vector<2x1024xf32>,
    return
  }
}

</mosaic_0001>

<llo_original>
// kernel: expression_forward.1
$region0: #{expression_forward.1}
  #allocation0 [shape = 'u32[]', space=smem, size = 0x4, offset = 0x4, fixed_abs, tag = 'smem constant byte address 0x4 - core index']
  #allocation1 [shape = 'u32[144,128]{1,0:T(1,128)}', space=vmem, size = 0x12000, scoped, tag = 'internal scratch']
  %s0 = inlined_call_operand.vmem [shape: f32[2,1024], index: 0, kind: input, shape index: {}]
  %s1 = inlined_call_operand.vmem [shape: f32[2,1024], index: 1, kind: output, shape index: {}]
  %s2 = sld [smem:[#allocation0]]
  $region14: #{expression_forward.1} parent=0
    _
  %s4 = ssub.s32 1, %s2
  %s5 = scalar_select 0, %s4, %s2
  // Predicated region
  $region2: #{expression_forward.1} parent=0 // pred_check
    _
  $region3: #{expression_forward.1} parent=0 // pred_check_branch
    %7 = sbr.rel (0) target = $region5
  $region4: #{expression_forward.1} parent=0 // pred_region
    _
  $region5: #{expression_forward.1} parent=0 // pred_fallthru
    _
  %v8 = vld [vmem:[%s0] sm:$0xff]
  %v9 = vld [vmem:[%s0 + $0x8] sm:$0xff]
  %v10 = vmul.f32 %v8, %v8
  %v11 = vmul.f32 %v9, %v9
  %v12 = vmax.f32 %v10, 1e-06
  %v13 = vmax.f32 %v11, 1e-06
  %v14 = vlog2.pop %v12
  %v15 = vmul.f32 %v14, 0.6931472
  %v16 = vlog2.pop %v13
  %v17 = vmul.f32 %v16, 0.6931472
  %18 = vst [vmem:[%s1] sm:$0xff] %v15
  %19 = vst [vmem:[%s1 + $0x8] sm:$0xff] %v17
  // Predicated region
  $region6: #{expression_forward.1} parent=0 // pred_check
    _
  $region7: #{expression_forward.1} parent=0 // pred_check_branch
    %21 = sbr.rel (0) target = $region9
  $region8: #{expression_forward.1} parent=0 // pred_region
    _
  $region9: #{expression_forward.1} parent=0 // pred_fallthru
    _
  // Predicated region
  $region10: #{expression_forward.1} parent=0 // pred_check
    _
  $region11: #{expression_forward.1} parent=0 // pred_check_branch
    %23 = sbr.rel (0) target = $region13
  $region12: #{expression_forward.1} parent=0 // pred_region
    _
  $region13: #{expression_forward.1} parent=0 // pred_fallthru
    _

</llo_original>
